<compile_context>
chip_gen: v6e
topology: v6e:2x2x1
jax: 0.10.0
libtpu: 0.0.40
codegen_flags: <defaults>
</compile_context>

<pallas_src>
import jax
import jax.numpy as jnp
from jax.experimental import pallas as pl
from jax.experimental.pallas import tpu as pltpu

_LANES = 128


def _avg_kernel(y1_ref, y2_ref, o_ref):
    # Elementwise hot path on the whole VMEM tile; VPU work is free filler,
    # the binding resource is the HBM<->VMEM DMA.
    o_ref[...] = (y1_ref[...] + y2_ref[...]) * 0.5


def _sublane_pack(dtype) -> int:
    """Rows-per-vreg packing factor for the given dtype."""
    return {4: 8, 2: 16, 1: 32}.get(jnp.dtype(dtype).itemsize, 8)


def _plan_tile_rows(rows, dtype, *, target_block_bytes=4 << 20, min_grid_steps=8):
    """Pick a row-tile: ~target_block_bytes per operand block, sublane-packed,
    but shrunk so the grid has at least `min_grid_steps` steps when possible."""
    itemsize = jnp.dtype(dtype).itemsize
    sub = _sublane_pack(dtype)
    if rows <= sub:
        # Single full-extent block (legal even if rows % 8 != 0).
        return rows, itemsize
    cap = max(sub, (target_block_bytes // (_LANES * itemsize)) // sub * sub)
    tr = min(cap, rows)
    if rows >= sub * min_grid_steps:
        per_step = -(-rows // min_grid_steps)          # ceil(rows / steps)
        per_step = -(-per_step // sub) * sub           # round up to sublane pack
        tr = min(tr, per_step)
    return min(tr, rows), itemsize


def _avg_pallas_2d(y1_2d, y2_2d):
    rows, lanes = y1_2d.shape
    tr, itemsize = _plan_tile_rows(rows, y1_2d.dtype)
    block_bytes = tr * lanes * itemsize
    # 3 operands x 2 buffers x block, with 2x margin; capped for v7x (64 MiB/TC).
    vmem_limit = int(min(56 << 20, max(32 << 20, 2 * 6 * block_bytes)))
    grid = (int(pl.cdiv(rows, tr)),)
    n_elems = rows * lanes

    return pl.pallas_call(
        _avg_kernel,
        out_shape=jax.ShapeDtypeStruct((rows, lanes), y1_2d.dtype),
        grid_spec=pltpu.PrefetchScalarGridSpec(
            num_scalar_prefetch=0,
            grid=grid,
            in_specs=[
                pl.BlockSpec((tr, lanes), lambda i: (i, 0)),
                pl.BlockSpec((tr, lanes), lambda i: (i, 0)),
            ],
            out_specs=pl.BlockSpec((tr, lanes), lambda i: (i, 0)),
        ),
        compiler_params=pltpu.CompilerParams(
            # Megacore sharding on v7x; harmless elsewhere.
            dimension_semantics=("parallel",),
            vmem_limit_bytes=vmem_limit,
        ),
        cost_estimate=pl.CostEstimate(
            flops=2 * n_elems,
            transcendentals=0,
            bytes_accessed=3 * n_elems * itemsize,
        ),
    )(y1_2d, y2_2d)


def strategy_forward(y1, y2, *, min_pallas_bytes=2 << 20, force_pallas=False):
    """Computes (y1 + y2) / 2, matching PyTorch `Strategy.forward` semantics."""
    assert y1.shape == y2.shape and y1.dtype == y2.dtype
    orig_shape = y1.shape
    n = y1.size
    itemsize = jnp.dtype(y1.dtype).itemsize

    # Integer inputs: PyTorch's (y1+y2)/2 returns a float tensor; use plain
    # JAX true-divide (same promotion) rather than an in-kernel float cast.
    if not jnp.issubdtype(y1.dtype, jnp.floating):
        return (y1 + y2) / 2

    # Tiny tensors: launch + pipeline prologue dominate and XLA fuses this
    # elementwise op for free — skip Pallas unless explicitly forced.
    if (not force_pallas) and (n * itemsize < min_pallas_bytes):
        return (y1 + y2) / 2

    # Only the lane (128) constraint applies to the array itself; partial row
    # tiles are masked by Pallas.  Avoid pad/slice HBM round trips: unaligned
    # sizes take the XLA fallback, or (when forced) the kernel runs on the
    # aligned prefix and the <128-element tail is handled outside the kernel.
    n_main = (n // _LANES) * _LANES
    if n_main == 0 or (n_main != n and not force_pallas):
        return (y1 + y2) / 2

    y1f = y1.reshape(-1)
    y2f = y2.reshape(-1)
    rows = n_main // _LANES
    main = _avg_pallas_2d(
        y1f[:n_main].reshape(rows, _LANES),
        y2f[:n_main].reshape(rows, _LANES),
    ).reshape(-1)

    if n_main == n:
        out = main
    else:
        tail = ((y1f[n_main:] + y2f[n_main:]) / 2).astype(main.dtype)
        out = jnp.concatenate([main, tail])
    return out.reshape(orig_shape)


if __name__ == "__main__":
    key = jax.random.PRNGKey(0)
    k1, k2 = jax.random.split(key)

    # Small NCHW-style inputs: batch=2, channels=4, spatial=16x16 (128-aligned).
    shape = (2, 4, 16, 16)
    y1 = jax.random.normal(k1, shape, dtype=jnp.float32)
    y2 = jax.random.normal(k2, shape, dtype=jnp.float32)

    # force_pallas=True so the Pallas kernel itself is exercised even though
    # this test shape is below the tiny-tensor bypass threshold.
    out = jax.block_until_ready(strategy_forward(y1, y2, force_pallas=True))
    ref = (y1 + y2) / 2
    assert out.shape == ref.shape and out.dtype == ref.dtype
    assert jnp.allclose(out, ref, atol=1e-6, rtol=1e-6)

    # Unaligned size: exercises the aligned-prefix kernel + tail path.
    k3, k4 = jax.random.split(k2)
    shape_u = (3, 5, 7, 5)  # 525 elements, not a multiple of 128
    y1u = jax.random.normal(k3, shape_u, dtype=jnp.float32)
    y2u = jax.random.normal(k4, shape_u, dtype=jnp.float32)
    outu = jax.block_until_ready(strategy_forward(y1u, y2u, force_pallas=True))
    refu = (y1u + y2u) / 2
    assert outu.shape == refu.shape and outu.dtype == refu.dtype
    assert jnp.allclose(outu, refu, atol=1e-6, rtol=1e-6)

    print("KERNEL_OK")
</pallas_src>

<mosaic_0001>
module attributes {stable_mosaic.version = 11 : i64} {
  func.func @_avg_kernel(%arg0: i32, %arg1: memref<16x128xf32, #tpu.memory_space<vmem>>, %arg2: memref<16x128xf32, #tpu.memory_space<vmem>>, %arg3: memref<16x128xf32, #tpu.memory_space<vmem>>) attributes {dimension_semantics = [#tpu.dimension_semantics<parallel>], iteration_bounds = array<i64: 1>, scalar_prefetch = 0 : i64, scratch_operands = 0 : i64, tpu.core_type = #tpu.core_type<tc>, window_params = [{transform_indices = @transform_0, window_bounds = array<i64: 16, 128>}, {transform_indices = @transform_1, window_bounds = array<i64: 16, 128>}, {transform_indices = @transform_2, window_bounds = array<i64: 16, 128>}]} {
    %c0 = arith.constant 0 : index
    %c0_0 = arith.constant 0 : index
    %0 = vector.load %arg1[%c0, %c0_0] : memref<16x128xf32, #tpu.memory_space<vmem>>, vector<16x128xf32>
    %c0_1 = arith.constant 0 : index
    %c0_2 = arith.constant 0 : index
    %1 = vector.load %arg2[%c0_1, %c0_2] : memref<16x128xf32, #tpu.memory_space<vmem>>, vector<16x128xf32>
    %2 = arith.addf %0, %1 : vector<16x128xf32>
    %cst = arith.constant 5.000000e-01 : f32
    %3 = vector.broadcast %cst : f32 to vector<16x128xf32>
    %4 = arith.mulf %2, %3 : vector<16x128xf32>
    %c0_3 = arith.constant 0 : index
    %c0_4 = arith.constant 0 : index
    %5 = vector.load %arg3[%c0_3, %c0_4] : memref<16x128xf32, #tpu.memory_space<vmem>>, vector<16x128xf32>
    tpu.vector_store %arg3[%c0_3, %c0_4], %4 {strides = array<i32>} : memref<16x128xf32, #tpu.memory_space<vmem>>, vector<16x128xf32>,
    return
  }
  func.func @transform_0(%arg0: i32) -> (i32, i32) {
    %c0_i32 = arith.constant 0 : i32
    %c0_i32_0 = arith.constant 0 : i32
    return %arg0, %c0_i32 : i32, i32
  }
  func.func @transform_1(%arg0: i32) -> (i32, i32) {
    %c0_i32 = arith.constant 0 : i32
    %c0_i32_0 = arith.constant 0 : i32
    return %arg0, %c0_i32 : i32, i32
  }
  func.func @transform_2(%arg0: i32) -> (i32, i32) {
    %c0_i32 = arith.constant 0 : i32
    %c0_i32_0 = arith.constant 0 : i32
    return %arg0, %c0_i32 : i32, i32
  }
}

</mosaic_0001>

<llo_original>
// kernel: tpu_custom_call.1
$region0: #{tpu_custom_call.1}
  #allocation0 [shape = 'u32[]', space=smem, size = 0x4, offset = 0x4, fixed_abs, tag = 'smem constant byte address 0x4 - core index']
  #allocation1 [shape = 'u32[144,128]{1,0:T(1,128)}', space=vmem, size = 0x12000, scoped, tag = 'internal scratch']
  %s0 = inlined_call_operand.hbm [shape: f32[16,128], index: 0, kind: input, shape index: {}]
  %s1 = inlined_call_operand.hbm [shape: f32[16,128], index: 1, kind: input, shape index: {}]
  %s2 = inlined_call_operand.hbm [shape: f32[16,128], index: 2, kind: output, shape index: {}]
  %s3 = sld [smem:[#allocation0]]
  $region26: #{tpu_custom_call.1} parent=0
    _
  %s5 = ssub.s32 1, %s3
  %s6 = scalar_select 0, %s5, %s3
  $region1: #{tpu_custom_call.1} parent=0
    #allocation2 [shape = 'u8[8192]{0}', space=vmem, size = 0x2000, scoped, tag = 'input window, operand 0, single buffered']
    #allocation3 [shape = 's32[1]{0}', space=sflag, size = 0x4, scoped, tag = 'scoped memory for tpu_custom_call.1']
    #allocation4 [shape = 's32[1]{0}', space=sflag, size = 0x4, scoped, tag = 'scoped memory for tpu_custom_call.1']
    #allocation5 [shape = 'u8[8192]{0}', space=vmem, size = 0x2000, scoped, tag = 'input window, operand 1, single buffered']
    #allocation6 [shape = 's32[1]{0}', space=sflag, size = 0x4, scoped, tag = 'scoped memory for tpu_custom_call.1']
    #allocation7 [shape = 'u8[8192]{0}', space=vmem, size = 0x2000, scoped, tag = 'output window, operand 0, single buffered']
    %7 = vsyncpa [#allocation3], 0
    %8 = vsyncpa [#allocation6], 0
    %9 = vsyncpa [#allocation4], 0
    // Predicated region
    $region2: #{tpu_custom_call.1} parent=1 // pred_check
      _
    $region3: #{tpu_custom_call.1} parent=1 // pred_check_branch
      %11 = sbr.rel (0) target = $region5
    $region4: #{tpu_custom_call.1} parent=1 // pred_region
      %s13 = ssub.s32 256, 256
      %14 = vsyncadd [#allocation3], %s13
      %s15 = sshll.u32 [#allocation2], 4
      %s16 = int_to_ptr.vmem [resolvable:$true] %s15
      %21 = dma.hbm_to_vmem [thread:$0]  %s0, 256, %s16, [#allocation3], 128, 128, 8
    $region5: #{tpu_custom_call.1} parent=1 // pred_fallthru
      _
    // Predicated region
    $region6: #{tpu_custom_call.1} parent=1 // pred_check
      _
    $region7: #{tpu_custom_call.1} parent=1 // pred_check_branch
      %23 = sbr.rel (0) target = $region9
    $region8: #{tpu_custom_call.1} parent=1 // pred_region
      %s25 = ssub.s32 256, 256
      %26 = vsyncadd [#allocation6], %s25
      %s27 = sshll.u32 [#allocation5], 4
      %s28 = int_to_ptr.vmem [resolvable:$true] %s27
      %33 = dma.hbm_to_vmem [thread:$0]  %s1, 256, %s28, [#allocation6], 128, 128, 8
    $region9: #{tpu_custom_call.1} parent=1 // pred_fallthru
      _
    // Predicated region
    $region10: #{tpu_custom_call.1} parent=1 // pred_check
      _
    $region11: #{tpu_custom_call.1} parent=1 // pred_check_branch
      %35 = sbr.rel (0) target = $region13
    $region12: #{tpu_custom_call.1} parent=1 // pred_region
      %36 = dma.done [#allocation3], 256
    $region13: #{tpu_custom_call.1} parent=1 // pred_fallthru
      _
    // Predicated region
    $region14: #{tpu_custom_call.1} parent=1 // pred_check
      _
    $region15: #{tpu_custom_call.1} parent=1 // pred_check_branch
      %38 = sbr.rel (0) target = $region17
    $region16: #{tpu_custom_call.1} parent=1 // pred_region
      %39 = dma.done [#allocation6], 256
    $region17: #{tpu_custom_call.1} parent=1 // pred_fallthru
      _
    %v40 = vld [vmem:[#allocation2] sm:$0xff]
    %v41 = vld [vmem:[#allocation2 + $0x8] sm:$0xff]
    %v42 = vld [vmem:[#allocation5] sm:$0xff]
    %v43 = vld [vmem:[#allocation5 + $0x8] sm:$0xff]
    %v44 = vadd.f32 %v40, %v42
    %v45 = vadd.f32 %v41, %v43
    %v46 = vmul.f32 %v44, 0.5
    %v47 = vmul.f32 %v45, 0.5
    %48 = vst [vmem:[#allocation7] sm:$0xff] %v46
    %49 = vst [vmem:[#allocation7 + $0x8] sm:$0xff] %v47
    // Predicated region
    $region18: #{tpu_custom_call.1} parent=1 // pred_check
      _
    $region19: #{tpu_custom_call.1} parent=1 // pred_check_branch
      %51 = sbr.rel (0) target = $region21
    $region20: #{tpu_custom_call.1} parent=1 // pred_region
      %s53 = ssub.s32 256, 256
      %54 = vsyncadd [#allocation4], %s53
      %s55 = sshll.u32 [#allocation7], 4
      %s56 = int_to_ptr.vmem [resolvable:$true] %s55
      %61 = dma.vmem_to_hbm [thread:$0]  %s56, 256, %s2, [#allocation4], 128, 128, 8
    $region21: #{tpu_custom_call.1} parent=1 // pred_fallthru
      _
    // Predicated region
    $region22: #{tpu_custom_call.1} parent=1 // pred_check
      _
    $region23: #{tpu_custom_call.1} parent=1 // pred_check_branch
      %63 = sbr.rel (0) target = $region25
    $region24: #{tpu_custom_call.1} parent=1 // pred_region
      %64 = dma.done [#allocation4], 256
    $region25: #{tpu_custom_call.1} parent=1 // pred_fallthru
      _
    %65 = vsyncpa [#allocation3], 1
    %66 = vsyncpa [#allocation6], 1
    %67 = vsyncpa [#allocation4], 1

</llo_original>
